<compile_context>
chip_gen: v6e
topology: v6e:2x2x1
jax: 0.10.0
libtpu: 0.0.40
codegen_flags: <defaults>
</compile_context>

<pallas_src>
import jax
import jax.numpy as jnp
from jax import lax
from jax.experimental import pallas as pl
from jax.experimental.pallas import tpu as pltpu


def _class_fold(compute_part, C, unroll_hint):
    """Accumulate per-class scalars compute_part(c) -> (1,1) into a (C,1) column vector."""
    row_sel = lax.broadcasted_iota(jnp.int32, (C, 1), 0)      # slot selector

    def body(c, y_col):
        return y_col + jnp.where(row_sel == c, compute_part(c), 0.0)

    init = jnp.zeros((C, 1), jnp.float32)
    if C <= 8:                         # tiny C: straight-line code (cheap, compiles trivially)
        y_col = init
        for c in range(C):
            y_col = body(c, y_col)
        return y_col
    # large C: bounded live ranges + scheduler-friendly partial unroll
    return lax.fori_loop(0, C, body, init, unroll=unroll_hint)


def _make_waveletatt_kernel(C, HW, HW_pad):
    """out = x * sigmoid(W2 @ relu(W1 @ (2 * mod-C class sum of x)))  -- one batch element."""
    fast = (HW % C == 0)               # class of (row, col) depends only on col
    pow2 = (C & (C - 1)) == 0
    unroll_hint = 4 if C % 4 == 0 else (2 if C % 2 == 0 else 1)

    def kernel(x_ref, w1t_ref, w2_ref, out_ref):
        # x_ref  : (1, C, HW_pad)  lane-dense activation block (zero-padded past HW)
        # w1t_ref: (C, C//2)       fc[0].weight transposed
        # w2_ref : (C, C//2)       fc[2].weight (native layout)

        if fast:
            # Hoisted sublane reduce: colsum[col] = sum_row x[row, col]   (f32 accumulation)
            colsum = jnp.sum(x_ref[0].astype(jnp.float32), axis=0, keepdims=True)  # (1, HW_pad)
            col_ids = lax.broadcasted_iota(jnp.int32, (1, HW_pad), 1)
            col_cls = (col_ids & (C - 1)) if pow2 else (col_ids % C)

            def part(c):  # sum of colsum over columns of class c  -> (1, 1)
                return jnp.sum(jnp.where(col_cls == c, colsum, 0.0), axis=1, keepdims=True)

            y_col = _class_fold(part, C, unroll_hint)
        else:
            # General fallback (HW % C != 0): masked class sum over the full slab.
            # Overflow-safe class formula:  (row*HW + col) % C == ((row*(HW%C))%C + col%C) % C.
            row_ids = lax.broadcasted_iota(jnp.int32, (C, HW_pad), 0)
            col_ids = lax.broadcasted_iota(jnp.int32, (C, HW_pad), 1)
            cls = ((row_ids * (HW % C)) % C + col_ids % C) % C

            def part(c):  # (1, 1); x re-read per class so no long-lived f32 slab copy
                m = jnp.where(cls == c, x_ref[0].astype(jnp.float32), 0.0)
                return jnp.sum(jnp.sum(m, axis=1, keepdims=True), axis=0, keepdims=True)

            y_col = _class_fold(part, C, unroll_hint)

        # LL = 2*x for nearest-x2-upsampled Haar input; all high-pass bands are exactly zero.
        y_col = 2.0 * y_col                                        # (C, 1)

        # Squeeze/excite MLP as broadcast-multiply + reductions (no tiny MXU matmuls/transposes).
        w1t = w1t_ref[...].astype(jnp.float32)                     # (C, C//2)
        w2 = w2_ref[...].astype(jnp.float32)                       # (C, C//2)
        h_row = jnp.maximum(jnp.sum(w1t * y_col, axis=0, keepdims=True), 0.0)  # (1, C//2)
        logits = jnp.sum(w2 * h_row, axis=1, keepdims=True)        # (C, 1)
        att = 1.0 / (1.0 + jnp.exp(-logits))                       # sigmoid (exp on EUP)

        # Per-channel rescale, computed in the I/O dtype (no full-slab f32 temp).
        out_ref[0] = (x_ref[0] * att.astype(out_ref.dtype)).astype(out_ref.dtype)

    return kernel


@jax.jit
def waveletatt_forward(x, w1, w2):
    """Waveletatt forward.  x: (B, C, H, W); w1: fc[0].weight (C//2, C); w2: fc[2].weight (C, C//2)."""
    B, C, H, W = x.shape
    HW = H * W
    pad = (-HW) % 128                      # keep the minor dim lane-dense (unmasked stores)
    HW_pad = HW + pad

    x_flat = x.reshape(B, C, HW)           # free row-major reshape (no data movement)
    if pad:
        x_flat = jnp.pad(x_flat, ((0, 0), (0, 0), (0, pad)))  # zeros don't perturb the sums
    w1t = jnp.transpose(w1)                # (C, C//2)

    # VMEM budget: in/out (1,C,HW_pad) blocks are each double-buffered, plus tiny weights/margin.
    itemsize = jnp.dtype(x.dtype).itemsize
    slab_bytes = C * HW_pad * itemsize
    w_bytes = 2 * C * (C // 2) * jnp.dtype(w1.dtype).itemsize
    vmem_needed = 4 * slab_bytes + 4 * w_bytes + (2 << 20)
    vmem_limit = int(min(max(vmem_needed, 32 << 20), 100 << 20))

    out = pl.pallas_call(
        _make_waveletatt_kernel(C, HW, HW_pad),
        out_shape=jax.ShapeDtypeStruct((B, C, HW_pad), x.dtype),
        grid_spec=pltpu.PrefetchScalarGridSpec(
            num_scalar_prefetch=0,
            grid=(B,),
            in_specs=[
                pl.BlockSpec((1, C, HW_pad), lambda b: (b, 0, 0)),
                pl.BlockSpec((C, C // 2), lambda b: (0, 0)),
                pl.BlockSpec((C, C // 2), lambda b: (0, 0)),
            ],
            out_specs=pl.BlockSpec((1, C, HW_pad), lambda b: (b, 0, 0)),
        ),
        compiler_params=pltpu.CompilerParams(
            dimension_semantics=("parallel",),
            vmem_limit_bytes=vmem_limit),
    )(x_flat, w1t, w2)

    if pad:
        out = out[:, :, :HW]
    return out.reshape(B, C, H, W)


def _reference_forward(x, w1, w2):
    """Pure-JAX reference mirroring the PyTorch module step by step."""
    B, C, H, W = x.shape
    xv = x.reshape(B, H, W, C)                               # torch .view on contiguous NCHW
    xp = jnp.transpose(xv, (0, 3, 2, 1))                     # (B, C, W, H)
    up = jnp.repeat(jnp.repeat(xp, 2, axis=2), 2, axis=3)    # nn.Upsample(scale_factor=2), nearest
    a = up[:, :, 0::2, 0::2]
    b = up[:, :, 0::2, 1::2]
    c = up[:, :, 1::2, 0::2]
    d = up[:, :, 1::2, 1::2]
    # Haar DWT subbands (LH/HL/HH are exactly zero for nearest-upsampled input,
    # so the sign convention does not affect the result).
    ll = (a + b + c + d) * 0.5
    lh = (a - b + c - d) * 0.5
    hl = (a + b - c - d) * 0.5
    hh = (a - b - c + d) * 0.5
    y = jnp.sum(ll + lh + hl + hh, axis=(2, 3))              # (B, C)
    h = jnp.maximum(y @ w1.T, 0.0)
    att = jax.nn.sigmoid(h @ w2.T)                           # (B, C)
    return x * att[:, :, None, None]


if __name__ == "__main__":
    B, C, H, W = 2, 4, 16, 16
    key = jax.random.PRNGKey(0)
    kx, k1, k2 = jax.random.split(key, 3)
    x = jax.random.normal(kx, (B, C, H, W), jnp.float32)
    # fc = Linear(C, C//2, bias=False) -> ReLU -> Linear(C//2, C, bias=False) -> Sigmoid
    w1 = 0.02 * jax.random.normal(k1, (C // 2, C), jnp.float32)   # fc[0].weight
    w2 = 0.5 * jax.random.normal(k2, (C, C // 2), jnp.float32)    # fc[2].weight

    out = waveletatt_forward(x, w1, w2)
    out = jax.block_until_ready(out)

    ref = _reference_forward(x, w1, w2)
    assert out.shape == (B, C, H, W)
    assert jnp.allclose(out, ref, atol=1e-4, rtol=1e-4), "mismatch vs JAX reference"

    print("KERNEL_OK")
</pallas_src>

<mosaic_0001>
module attributes {stable_mosaic.version = 11 : i64} {
  func.func @kernel(%arg0: i32, %arg1: memref<1x4x256xf32, #tpu.memory_space<vmem>>, %arg2: memref<4x2xf32, #tpu.memory_space<vmem>>, %arg3: memref<4x2xf32, #tpu.memory_space<vmem>>, %arg4: memref<1x4x256xf32, #tpu.memory_space<vmem>>) attributes {dimension_semantics = [#tpu.dimension_semantics<parallel>], iteration_bounds = array<i64: 2>, scalar_prefetch = 0 : i64, scratch_operands = 0 : i64, tpu.core_type = #tpu.core_type<tc>, window_params = [{transform_indices = @transform_0, window_bounds = array<i64: 1, 4, 256>}, {pipeline_mode = #tpu.pipeline_mode<synchronous>, transform_indices = @transform_1, window_bounds = array<i64: 4, 2>}, {pipeline_mode = #tpu.pipeline_mode<synchronous>, transform_indices = @transform_2, window_bounds = array<i64: 4, 2>}, {transform_indices = @transform_3, window_bounds = array<i64: 1, 4, 256>}]} {
    %c0 = arith.constant 0 : index
    %c0_0 = arith.constant 0 : index
    %c0_1 = arith.constant 0 : index
    %0 = vector.load %arg1[%c0, %c0_0, %c0_1] : memref<1x4x256xf32, #tpu.memory_space<vmem>>, vector<1x4x256xf32>
    %1 = vector.shape_cast %0 : vector<1x4x256xf32> to vector<4x256xf32>
    %cst = arith.constant dense<0.000000e+00> : vector<256xf32>
    %2 = vector.multi_reduction <add>, %1, %cst [0] : vector<4x256xf32> to vector<256xf32>
    %3 = vector.shape_cast %2 : vector<256xf32> to vector<1x256xf32>
    %4 = tpu.iota {dimensions = array<i32: 1>} : vector<1x256xi32>
    %c3_i32 = arith.constant 3 : i32
    %5 = vector.broadcast %c3_i32 : i32 to vector<1x256xi32>
    %6 = arith.andi %4, %5 : vector<1x256xi32>
    %7 = tpu.iota {dimensions = array<i32: 0>} : vector<4x1xi32>
    %cst_2 = arith.constant 0.000000e+00 : f32
    %8 = vector.broadcast %cst_2 : f32 to vector<4x1xf32>
    %c0_i32 = arith.constant 0 : i32
    %9 = vector.broadcast %c0_i32 : i32 to vector<4x1xi32>
    %10 = arith.cmpi eq, %7, %9 : vector<4x1xi32>
    %c0_i32_3 = arith.constant 0 : i32
    %11 = vector.broadcast %c0_i32_3 : i32 to vector<1x256xi32>
    %12 = arith.cmpi eq, %6, %11 : vector<1x256xi32>
    %cst_4 = arith.constant 0.000000e+00 : f32
    %13 = vector.broadcast %cst_4 : f32 to vector<1x256xf32>
    %14 = arith.select %12, %3, %13 : vector<1x256xi1>, vector<1x256xf32>
    %cst_5 = arith.constant dense<0.000000e+00> : vector<1xf32>
    %15 = vector.multi_reduction <add>, %14, %cst_5 [1] : vector<1x256xf32> to vector<1xf32>
    %16 = vector.shape_cast %15 : vector<1xf32> to vector<1x1xf32>
    %cst_6 = arith.constant 0.000000e+00 : f32
    %17 = vector.shape_cast %16 : vector<1x1xf32> to vector<1x1xf32>
    %18 = vector.broadcast %17 : vector<1x1xf32> to vector<4x1xf32>
    %19 = vector.broadcast %cst_6 : f32 to vector<4x1xf32>
    %20 = arith.select %10, %18, %19 : vector<4x1xi1>, vector<4x1xf32>
    %21 = arith.addf %8, %20 : vector<4x1xf32>
    %c1_i32 = arith.constant 1 : i32
    %22 = vector.broadcast %c1_i32 : i32 to vector<4x1xi32>
    %23 = arith.cmpi eq, %7, %22 : vector<4x1xi32>
    %c1_i32_7 = arith.constant 1 : i32
    %24 = vector.broadcast %c1_i32_7 : i32 to vector<1x256xi32>
    %25 = arith.cmpi eq, %6, %24 : vector<1x256xi32>
    %cst_8 = arith.constant 0.000000e+00 : f32
    %26 = vector.broadcast %cst_8 : f32 to vector<1x256xf32>
    %27 = arith.select %25, %3, %26 : vector<1x256xi1>, vector<1x256xf32>
    %cst_9 = arith.constant dense<0.000000e+00> : vector<1xf32>
    %28 = vector.multi_reduction <add>, %27, %cst_9 [1] : vector<1x256xf32> to vector<1xf32>
    %29 = vector.shape_cast %28 : vector<1xf32> to vector<1x1xf32>
    %cst_10 = arith.constant 0.000000e+00 : f32
    %30 = vector.shape_cast %29 : vector<1x1xf32> to vector<1x1xf32>
    %31 = vector.broadcast %30 : vector<1x1xf32> to vector<4x1xf32>
    %32 = vector.broadcast %cst_10 : f32 to vector<4x1xf32>
    %33 = arith.select %23, %31, %32 : vector<4x1xi1>, vector<4x1xf32>
    %34 = arith.addf %21, %33 : vector<4x1xf32>
    %c2_i32 = arith.constant 2 : i32
    %35 = vector.broadcast %c2_i32 : i32 to vector<4x1xi32>
    %36 = arith.cmpi eq, %7, %35 : vector<4x1xi32>
    %c2_i32_11 = arith.constant 2 : i32
    %37 = vector.broadcast %c2_i32_11 : i32 to vector<1x256xi32>
    %38 = arith.cmpi eq, %6, %37 : vector<1x256xi32>
    %cst_12 = arith.constant 0.000000e+00 : f32
    %39 = vector.broadcast %cst_12 : f32 to vector<1x256xf32>
    %40 = arith.select %38, %3, %39 : vector<1x256xi1>, vector<1x256xf32>
    %cst_13 = arith.constant dense<0.000000e+00> : vector<1xf32>
    %41 = vector.multi_reduction <add>, %40, %cst_13 [1] : vector<1x256xf32> to vector<1xf32>
    %42 = vector.shape_cast %41 : vector<1xf32> to vector<1x1xf32>
    %cst_14 = arith.constant 0.000000e+00 : f32
    %43 = vector.shape_cast %42 : vector<1x1xf32> to vector<1x1xf32>
    %44 = vector.broadcast %43 : vector<1x1xf32> to vector<4x1xf32>
    %45 = vector.broadcast %cst_14 : f32 to vector<4x1xf32>
    %46 = arith.select %36, %44, %45 : vector<4x1xi1>, vector<4x1xf32>
    %47 = arith.addf %34, %46 : vector<4x1xf32>
    %c3_i32_15 = arith.constant 3 : i32
    %48 = vector.broadcast %c3_i32_15 : i32 to vector<4x1xi32>
    %49 = arith.cmpi eq, %7, %48 : vector<4x1xi32>
    %c3_i32_16 = arith.constant 3 : i32
    %50 = vector.broadcast %c3_i32_16 : i32 to vector<1x256xi32>
    %51 = arith.cmpi eq, %6, %50 : vector<1x256xi32>
    %cst_17 = arith.constant 0.000000e+00 : f32
    %52 = vector.broadcast %cst_17 : f32 to vector<1x256xf32>
    %53 = arith.select %51, %3, %52 : vector<1x256xi1>, vector<1x256xf32>
    %cst_18 = arith.constant dense<0.000000e+00> : vector<1xf32>
    %54 = vector.multi_reduction <add>, %53, %cst_18 [1] : vector<1x256xf32> to vector<1xf32>
    %55 = vector.shape_cast %54 : vector<1xf32> to vector<1x1xf32>
    %cst_19 = arith.constant 0.000000e+00 : f32
    %56 = vector.shape_cast %55 : vector<1x1xf32> to vector<1x1xf32>
    %57 = vector.broadcast %56 : vector<1x1xf32> to vector<4x1xf32>
    %58 = vector.broadcast %cst_19 : f32 to vector<4x1xf32>
    %59 = arith.select %49, %57, %58 : vector<4x1xi1>, vector<4x1xf32>
    %60 = arith.addf %47, %59 : vector<4x1xf32>
    %cst_20 = arith.constant 2.000000e+00 : f32
    %61 = vector.broadcast %cst_20 : f32 to vector<4x1xf32>
    %62 = arith.mulf %61, %60 : vector<4x1xf32>
    %c0_21 = arith.constant 0 : index
    %c0_22 = arith.constant 0 : index
    %63 = vector.load %arg2[%c0_21, %c0_22] : memref<4x2xf32, #tpu.memory_space<vmem>>, vector<4x2xf32>
    %c0_23 = arith.constant 0 : index
    %c0_24 = arith.constant 0 : index
    %64 = vector.load %arg3[%c0_23, %c0_24] : memref<4x2xf32, #tpu.memory_space<vmem>>, vector<4x2xf32>
    %65 = vector.broadcast %62 : vector<4x1xf32> to vector<4x2xf32>
    %66 = arith.mulf %63, %65 : vector<4x2xf32>
    %cst_25 = arith.constant dense<0.000000e+00> : vector<2xf32>
    %67 = vector.multi_reduction <add>, %66, %cst_25 [0] : vector<4x2xf32> to vector<2xf32>
    %68 = vector.shape_cast %67 : vector<2xf32> to vector<1x2xf32>
    %cst_26 = arith.constant 0.000000e+00 : f32
    %69 = vector.broadcast %cst_26 : f32 to vector<1x2xf32>
    %70 = arith.maximumf %68, %69 : vector<1x2xf32>
    %71 = vector.broadcast %70 : vector<1x2xf32> to vector<4x2xf32>
    %72 = arith.mulf %64, %71 : vector<4x2xf32>
    %cst_27 = arith.constant dense<0.000000e+00> : vector<4xf32>
    %73 = vector.multi_reduction <add>, %72, %cst_27 [1] : vector<4x2xf32> to vector<4xf32>
    %74 = vector.shape_cast %73 : vector<4xf32> to vector<4x1xf32>
    %cst_28 = arith.constant 0.000000e+00 : f32
    %75 = vector.broadcast %cst_28 : f32 to vector<4x1xf32>
    %76 = arith.subf %75, %74 : vector<4x1xf32>
    %77 = math.exp %76 : vector<4x1xf32>
    %cst_29 = arith.constant 1.000000e+00 : f32
    %78 = vector.broadcast %cst_29 : f32 to vector<4x1xf32>
    %79 = arith.addf %78, %77 : vector<4x1xf32>
    %cst_30 = arith.constant 1.000000e+00 : f32
    %80 = vector.broadcast %cst_30 : f32 to vector<4x1xf32>
    %81 = arith.divf %80, %79 : vector<4x1xf32>
    %c0_31 = arith.constant 0 : index
    %c0_32 = arith.constant 0 : index
    %c0_33 = arith.constant 0 : index
    %82 = vector.load %arg1[%c0_31, %c0_32, %c0_33] : memref<1x4x256xf32, #tpu.memory_space<vmem>>, vector<1x4x256xf32>
    %83 = vector.shape_cast %82 : vector<1x4x256xf32> to vector<4x256xf32>
    %84 = vector.broadcast %81 : vector<4x1xf32> to vector<4x256xf32>
    %85 = arith.mulf %83, %84 : vector<4x256xf32>
    %c0_34 = arith.constant 0 : index
    %c0_35 = arith.constant 0 : index
    %c0_36 = arith.constant 0 : index
    %86 = vector.load %arg4[%c0_34, %c0_35, %c0_36] : memref<1x4x256xf32, #tpu.memory_space<vmem>>, vector<1x4x256xf32>
    %87 = vector.shape_cast %86 : vector<1x4x256xf32> to vector<4x256xf32>
    %88 = vector.shape_cast %85 : vector<4x256xf32> to vector<1x4x256xf32>
    tpu.vector_store %arg4[%c0_34, %c0_35, %c0_36], %88 {strides = array<i32>} : memref<1x4x256xf32, #tpu.memory_space<vmem>>, vector<1x4x256xf32>,
    return
  }
  func.func @transform_0(%arg0: i32) -> (i32, i32, i32) {
    %c0_i32 = arith.constant 0 : i32
    %c0_i32_0 = arith.constant 0 : i32
    %c0_i32_1 = arith.constant 0 : i32
    return %arg0, %c0_i32, %c0_i32_0 : i32, i32, i32
  }
  func.func @transform_1(%arg0: i32) -> (i32, i32) {
    %c0_i32 = arith.constant 0 : i32
    %c0_i32_0 = arith.constant 0 : i32
    %c0_i32_1 = arith.constant 0 : i32
    return %c0_i32, %c0_i32_0 : i32, i32
  }
  func.func @transform_2(%arg0: i32) -> (i32, i32) {
    %c0_i32 = arith.constant 0 : i32
    %c0_i32_0 = arith.constant 0 : i32
    %c0_i32_1 = arith.constant 0 : i32
    return %c0_i32, %c0_i32_0 : i32, i32
  }
  func.func @transform_3(%arg0: i32) -> (i32, i32, i32) {
    %c0_i32 = arith.constant 0 : i32
    %c0_i32_0 = arith.constant 0 : i32
    %c0_i32_1 = arith.constant 0 : i32
    return %arg0, %c0_i32, %c0_i32_0 : i32, i32, i32
  }
}

</mosaic_0001>

<llo_original>
// kernel: waveletatt_forward.1
$region0: #{waveletatt_forward.1}
  #allocation0 [shape = 'u32[]', space=smem, size = 0x4, offset = 0x4, fixed_abs, tag = 'smem constant byte address 0x4 - core index']
  #allocation1 [shape = 'u32[144,128]{1,0:T(1,128)}', space=vmem, size = 0x12000, scoped, tag = 'internal scratch']
  %s0 = inlined_call_operand.vmem [shape: f32[2,4,256], index: 0, kind: input, shape index: {}]
  %s1 = inlined_call_operand.vmem [shape: f32[4,2], index: 1, kind: input, shape index: {}]
  %s2 = inlined_call_operand.vmem [shape: f32[4,2], index: 2, kind: input, shape index: {}]
  %s3 = inlined_call_operand.vmem [shape: f32[2,4,256], index: 3, kind: output, shape index: {}]
  %s4 = sld [smem:[#allocation0]]
  $region45: #{waveletatt_forward.1} parent=0
    _
  %s6 = ssub.s32 1, %s4
  %s7 = scalar_select 0, %s6, %s4
  loop: start=0, step=1, limit=4
  $region2: #{waveletatt_forward.1} parent=0 // loop_pre_header
    _
  $region3: #{waveletatt_forward.1} parent=0 // loop_header
    %s9 = sphi 0, %s13
    %p10 = scmp.ge.s32.totalorder %s9, 4
    %s19 = sphi 0, %s21
    %s22 = sphi 0, %s19
    %s23 = sphi 0, %s22
    %s39 = sphi 0, %s23
    %s43 = sphi 0, %s43
    %s45 = sphi 0, %s43
    %s46 = sphi 0, %s45
    %s60 = sphi 0, %s46
    %s64 = sphi 0, %s64
    %s66 = sphi 0, %s64
    %s67 = sphi 0, %s66
    %s81 = sphi 0, %s67
    %s87 = sphi 0, %s89
    %s90 = sphi 0, %s87
    %s91 = sphi 0, %s90
    %s107 = sphi 0, %s91
  $region4: #{waveletatt_forward.1} parent=0 // loop_header_branch
    %12 = sbr.rel (%p10) target = $region8
  $region5: #{waveletatt_forward.1} parent=0 // loop_body
    %s14 = ssub.s32 %s9, 1
    %s15 = ssub.s32 %s9, 2
    %s16 = sadd.s32 %s9, 1
    %s17 = ssub.s32 %s9, %s16
    %p18 = scmp.eq.s32.totalorder %s17, 0
    %s20 = sadd.s32 %s19, 1
    %s21 = scalar_select %p18, %s19, %s20
    %p24 = pneg %p18
    %p25 = scmp.eq.s32.totalorder %s9, 1
    %p26 = por %p24, %p25
    %p27 = scmp.ne.s32.totalorder %s19, %s22
    %p28 = scmp.eq.s32.totalorder %s9, 0
    %p29 = por %p27, %p28
    %p30 = scmp.ne.s32.totalorder %s19, %s22
    %p31 = scmp.eq.s32.totalorder %s14, 1
    %p32 = por %p30, %p31
    %p33 = scmp.ne.s32.totalorder %s22, %s23
    %p34 = scmp.eq.s32.totalorder %s14, 0
    %p35 = por %p33, %p34
    %p36 = scmp.ne.s32.totalorder %s22, %s23
    %p37 = scmp.eq.s32.totalorder %s15, 1
    %p38 = por %p36, %p37
    %p40 = scmp.ne.s32.totalorder %s23, %s39
    %p41 = scmp.eq.s32.totalorder %s15, 0
    %p42 = por %p40, %p41
    %s44 = sadd.s32 %s43, 1
    %p47 = scmp.eq.s32.totalorder %s9, 1
    %p48 = scmp.ne.s32.totalorder %s43, %s45
    %p49 = scmp.eq.s32.totalorder %s9, 0
    %p50 = por %p48, %p49
    %p51 = scmp.ne.s32.totalorder %s43, %s45
    %p52 = scmp.eq.s32.totalorder %s14, 1
    %p53 = por %p51, %p52
    %p54 = scmp.ne.s32.totalorder %s45, %s46
    %p55 = scmp.eq.s32.totalorder %s14, 0
    %p56 = por %p54, %p55
    %p57 = scmp.ne.s32.totalorder %s45, %s46
    %p58 = scmp.eq.s32.totalorder %s15, 1
    %p59 = por %p57, %p58
    %p61 = scmp.ne.s32.totalorder %s46, %s60
    %p62 = scmp.eq.s32.totalorder %s15, 0
    %p63 = por %p61, %p62
    %s65 = sadd.s32 %s64, 1
    %p68 = scmp.eq.s32.totalorder %s9, 1
    %p69 = scmp.ne.s32.totalorder %s64, %s66
    %p70 = scmp.eq.s32.totalorder %s9, 0
    %p71 = por %p69, %p70
    %p72 = scmp.ne.s32.totalorder %s64, %s66
    %p73 = scmp.eq.s32.totalorder %s14, 1
    %p74 = por %p72, %p73
    %p75 = scmp.ne.s32.totalorder %s66, %s67
    %p76 = scmp.eq.s32.totalorder %s14, 0
    %p77 = por %p75, %p76
    %p78 = scmp.ne.s32.totalorder %s66, %s67
    %p79 = scmp.eq.s32.totalorder %s15, 1
    %p80 = por %p78, %p79
    %p82 = scmp.ne.s32.totalorder %s67, %s81
    %p83 = scmp.eq.s32.totalorder %s15, 0
    %p84 = por %p82, %p83
    %s85 = ssub.s32 %s9, %s16
    %p86 = scmp.eq.s32.totalorder %s85, 0
    %s88 = sadd.s32 %s87, 1
    %s89 = scalar_select %p86, %s87, %s88
    %p92 = pneg %p86
    %p93 = scmp.eq.s32.totalorder %s9, 1
    %p94 = por %p92, %p93
    %p95 = scmp.ne.s32.totalorder %s87, %s90
    %p96 = scmp.eq.s32.totalorder %s9, 0
    %p97 = por %p95, %p96
    %p98 = scmp.ne.s32.totalorder %s87, %s90
    %p99 = scmp.eq.s32.totalorder %s14, 1
    %p100 = por %p98, %p99
    %p101 = scmp.ne.s32.totalorder %s90, %s91
    %p102 = scmp.eq.s32.totalorder %s14, 0
    %p103 = por %p101, %p102
    %p104 = scmp.ne.s32.totalorder %s90, %s91
    %p105 = scmp.eq.s32.totalorder %s15, 1
    %p106 = por %p104, %p105
    %p108 = scmp.ne.s32.totalorder %s91, %s107
    %p109 = scmp.eq.s32.totalorder %s15, 0
    %p110 = por %p108, %p109
    %p111 = scmp.le.s32.totalorder 1, %s9
    %p112 = scmp.lt.s32.totalorder %s9, 3
    %p113 = pnand %p111, %p112
    %p114 = pneg %p113
    // Predicated region
    $region9: #{waveletatt_forward.1} parent=5 // pred_check
      _
    $region10: #{waveletatt_forward.1} parent=5 // pred_check_branch
      %116 = sbr.rel (%p113) target = $region12
    $region11: #{waveletatt_forward.1} parent=5 // pred_region
      %s117 = ssub.s32 %s9, 1
      // Predicated region
      $region13: #{waveletatt_forward.1} parent=11 // pred_check
        %p118 = pneg %p56
      $region14: #{waveletatt_forward.1} parent=11 // pred_check_branch
        %120 = sbr.rel (%p118) target = $region16
      $region15: #{waveletatt_forward.1} parent=11 // pred_region
        _
      $region16: #{waveletatt_forward.1} parent=11 // pred_fallthru
        _
      // Predicated region
      $region17: #{waveletatt_forward.1} parent=11 // pred_check
        %p121 = pneg %p77
      $region18: #{waveletatt_forward.1} parent=11 // pred_check_branch
        %123 = sbr.rel (%p121) target = $region20
      $region19: #{waveletatt_forward.1} parent=11 // pred_region
        _
      $region20: #{waveletatt_forward.1} parent=11 // pred_fallthru
        _
    $region12: #{waveletatt_forward.1} parent=5 // pred_fallthru
      _
    %p124 = scmp.lt.s32.totalorder %s9, 2
    // Predicated region
    $region21: #{waveletatt_forward.1} parent=5 // pred_check
      %p125 = pneg %p124
    $region22: #{waveletatt_forward.1} parent=5 // pred_check_branch
      %127 = sbr.rel (%p125) target = $region24
    $region23: #{waveletatt_forward.1} parent=5 // pred_region
      // Predicated region
      $region25: #{waveletatt_forward.1} parent=23 // pred_check
        %p128 = pneg %p29
      $region26: #{waveletatt_forward.1} parent=23 // pred_check_branch
        %130 = sbr.rel (%p128) target = $region28
      $region27: #{waveletatt_forward.1} parent=23 // pred_region
        %p131 = scmp.lt.s32.totalorder %s9, 1
        %s132 = scalar_select %p131, %s9, 1
        %s133 = smul.addr %s132, 2
        %s134 = smul.addr %s133, 4
        %s135 = scalar_lea.vmem %s0, %s134
      $region28: #{waveletatt_forward.1} parent=23 // pred_fallthru
        _
    $region24: #{waveletatt_forward.1} parent=5 // pred_fallthru
      _
    %p136 = scmp.le.s32.totalorder 1, %s9
    %p137 = scmp.lt.s32.totalorder %s9, 3
    %p138 = pnand %p136, %p137
    %p139 = pneg %p138
    // Predicated region
    $region29: #{waveletatt_forward.1} parent=5 // pred_check
      _
    $region30: #{waveletatt_forward.1} parent=5 // pred_check_branch
      %141 = sbr.rel (%p138) target = $region32
    $region31: #{waveletatt_forward.1} parent=5 // pred_region
      %s142 = ssub.s32 %s9, 1
      %p143 = scmp.lt.s32.totalorder %s14, 1
      %s144 = scalar_select %p143, %s14, 1
      %s145 = smul.addr %s144, 2
      %s146 = smul.addr %s145, 4
      %s147 = scalar_lea.vmem %s0, %s146
      %p148 = pneg %p35
      %p149 = pneg %p32
      %p150 = pneg %p56
      %p151 = pneg %p53
      %p152 = pneg %p77
      %p153 = pneg %p74
      %p154 = pneg %p103
      %p155 = pneg %p100
      %p156 = scmp.lt.s32.totalorder %s14, 1
      %s157 = scalar_select %p156, %s14, 1
      %s158 = smul.addr %s157, 2
      %s159 = smul.addr %s158, 4
      %s160 = scalar_lea.vmem %s3, %s159
      %p161 = scmp.lt.s32.totalorder %s14, 1
      %s162 = scalar_select %p161, %s14, 1
      %s163 = smul.addr %s162, 2
      %s164 = smul.addr %s163, 4
      %s165 = scalar_lea.vmem %s0, %s164
      %p166 = scmp.lt.s32.totalorder %s14, 1
      %s167 = scalar_select %p166, %s14, 1
      %s168 = smul.addr %s167, 2
      %s169 = smul.addr %s168, 4
      %s170 = scalar_lea.vmem %s3, %s169
      %v171 = vld [vmem:[%s165] sm:$0xff]
      %v173 = vcombine.high %v171, %v171
      %vm175 = vcmask 1043456
      %v176 = vsel %vm175, %v171, 0.0
      %v177 = vrot.slane %v176, 4
      %v178 = vadd.f32 %v176, %v177
      %v179 = vrot.slane %v178, 2
      %v180 = vadd.f32 %v178, %v179
      %v181 = vrot.slane %v180, 1
      %v182 = vadd.f32 %v180, %v181
      %v183 = vsel %vm175, %v173, 0.0
      %v184 = vrot.slane %v183, 4
      %v185 = vadd.f32 %v183, %v184
      %v186 = vrot.slane %v185, 2
      %v187 = vadd.f32 %v185, %v186
      %v188 = vrot.slane %v187, 1
      %v189 = vadd.f32 %v187, %v188
      %v190 = vlaneseq
      %v191 = vand.u32 %v190, 127
      %v192 = vadd.s32 %v191, 128
      %v193 = vand.u32 %v191, 3
      %v194 = vand.u32 %v192, 3
      %v195 = vlaneseq
      %v196 = vshrl.u32 %v195, 7
      %vm197 = vcmp.eq.s32.totalorder %v196, 0
      %vm198 = vcmp.eq.s32.totalorder %v193, 0
      %vm199 = vcmp.eq.s32.totalorder %v194, 0
      %v200 = vsel %vm198, %v182, 0.0
      %v201 = vsel %vm199, %v189, 0.0
      %v202 = vadd.f32 %v200, %v201
      %203 = vadd.xlane.f32.xlu0 %v202
      %v204 = vpop.xlane.xlu0 %203
      %v205 = vsel %vm197, %v204, 0.0
      %v206 = vadd.f32 %v205, 0.0
      %vm207 = vcmp.eq.s32.totalorder %v196, 1
      %vm208 = vcmp.eq.s32.totalorder %v193, 1
      %vm209 = vcmp.eq.s32.totalorder %v194, 1
      %v210 = vsel %vm208, %v182, 0.0
      %v211 = vsel %vm209, %v189, 0.0
      %v212 = vadd.f32 %v210, %v211
      %213 = vadd.xlane.f32.xlu0 %v212
      %v214 = vpop.xlane.xlu0 %213
      %v215 = vsel %vm207, %v214, 0.0
      %v216 = vadd.f32 %v206, %v215
      %vm217 = vcmp.eq.s32.totalorder %v196, 2
      %vm218 = vcmp.eq.s32.totalorder %v193, 2
      %vm219 = vcmp.eq.s32.totalorder %v194, 2
      %v220 = vsel %vm218, %v182, 0.0
      %v221 = vsel %vm219, %v189, 0.0
      %v222 = vadd.f32 %v220, %v221
      %223 = vadd.xlane.f32.xlu0 %v222
      %v224 = vpop.xlane.xlu0 %223
      %v225 = vsel %vm217, %v224, 0.0
      %v226 = vadd.f32 %v216, %v225
      %vm227 = vcmp.eq.s32.totalorder %v196, 3
      %vm228 = vcmp.eq.s32.totalorder %v193, 3
      %vm229 = vcmp.eq.s32.totalorder %v194, 3
      %v230 = vsel %vm228, %v182, 0.0
      %v231 = vsel %vm229, %v189, 0.0
      %v232 = vadd.f32 %v230, %v231
      %233 = vadd.xlane.f32.xlu0 %v232
      %v234 = vpop.xlane.xlu0 %233
      %v235 = vsel %vm227, %v234, 0.0
      %v236 = vadd.f32 %v226, %v235
      %v237 = vmul.f32 %v236, 2.0
      %v238 = vld [vmem:[%s1] sm:$0xf]
      %v239 = vld [vmem:[%s2] sm:$0xf]
      %v240 = vmul.f32 %v238, %v237
      %vm241 = vcmask 11264
      %v242 = vsel %vm241, %v240, 0.0
      %v243 = vrot.slane %v242, 4
      %v244 = vadd.f32 %v242, %v243
      %v245 = vrot.slane %v244, 2
      %v246 = vadd.f32 %v244, %v245
      %v247 = vrot.slane %v246, 1
      %v248 = vadd.f32 %v246, %v247
      %v249 = vmax.f32 %v248, 0.0
      %v250 = vmul.f32 %v239, %v249
      %v251 = vsel %vm241, %v250, 0.0
      %252 = vadd.xlane.f32.xlu0 %v251
      %v253 = vpop.xlane.xlu0 %252
      %v254 = vsub.f32 0.0, %v253
      %v255 = vmul.f32 %v254, 1.442695
      %v256 = vpow.pop %v255
      %v257 = vadd.f32 %v256, 1.0
      %v258 = vrcp.pop %v257
      %v259 = vmul.f32 1.0, %v258
      %v262 = vunpack.c.l.s4 839922192
      %v263 = vunpack.c.0.s8 %v262
      %v264 = vlaneseq
      %v265 = vshrl.u32 %v264, 7
      %v266 = vsub.s32 %v263, %v265
      %v267 = vrot.slane %v259, %v266
      %v269 = vmul.f32 %v171, %v267
      %270 = vst [vmem:[%s170] sm:$0xff] %v269
      %p271 = scmp.lt.s32.totalorder %s14, 1
      %s272 = scalar_select %p271, %s14, 1
      %s273 = smul.addr %s272, 2
      %s274 = smul.addr %s273, 4
      %s275 = scalar_lea.vmem %s3, %s274
      // Predicated region
      $region33: #{waveletatt_forward.1} parent=31 // pred_check
        %p276 = pneg %p100
      $region34: #{waveletatt_forward.1} parent=31 // pred_check_branch
        %278 = sbr.rel (%p276) target = $region36
      $region35: #{waveletatt_forward.1} parent=31 // pred_region
        _
      $region36: #{waveletatt_forward.1} parent=31 // pred_fallthru
        _
    $region32: #{waveletatt_forward.1} parent=5 // pred_fallthru
      _
    %p279 = scmp.le.s32.totalorder 2, %s9
    // Predicated region
    $region37: #{waveletatt_forward.1} parent=5 // pred_check
      %p280 = pneg %p279
    $region38: #{waveletatt_forward.1} parent=5 // pred_check_branch
      %282 = sbr.rel (%p280) target = $region40
    $region39: #{waveletatt_forward.1} parent=5 // pred_region
      %s283 = ssub.s32 %s9, 2
      // Predicated region
      $region41: #{waveletatt_forward.1} parent=39 // pred_check
        %p284 = pneg %p106
      $region42: #{waveletatt_forward.1} parent=39 // pred_check_branch
        %286 = sbr.rel (%p284) target = $region44
      $region43: #{waveletatt_forward.1} parent=39 // pred_region
        %p287 = scmp.lt.s32.totalorder %s15, 1
        %s288 = scalar_select %p287, %s15, 1
        %s289 = smul.addr %s288, 2
        %s290 = smul.addr %s289, 4
        %s291 = scalar_lea.vmem %s3, %s290
      $region44: #{waveletatt_forward.1} parent=39 // pred_fallthru
        _
    $region40: #{waveletatt_forward.1} parent=5 // pred_fallthru
      _
  $region6: #{waveletatt_forward.1} parent=0 // loop_footer
    %s13 = sadd.s32 1, %s9
  $region7: #{waveletatt_forward.1} parent=0 // loop_footer_branch
    %8 = sbr.rel target = $region3
  $region8: #{waveletatt_forward.1} parent=0 // loop_exit
    _

</llo_original>
